<compile_context>
chip_gen: v5e
topology: v5e:2x2
jax: 0.10.0
libtpu: 0.0.40
codegen_flags: <defaults>
</compile_context>

<pallas_src>
import functools

import jax
import jax.numpy as jnp
from jax import lax
from jax.experimental import pallas as pl
from jax.experimental.pallas import tpu as pltpu


def _rmsnorm_kernel(x_ref, w_ref, o_ref, *, eps: float, add_unit_offset: bool):
    # x_ref: (block_rows, hidden), w_ref: (1, hidden), o_ref: (block_rows, hidden)
    x_in = x_ref[...]
    x = x_in.astype(jnp.float32)
    norm_x = jnp.mean(x * x, axis=-1, keepdims=True)
    # Cast back to the input dtype *before* the weight multiply (as in PyTorch).
    x_normed = (x * lax.rsqrt(norm_x + eps)).astype(x_in.dtype)
    w = w_ref[...]
    # (1 + weight) stays in the weight dtype, matching the reference semantics.
    scale = (w + 1.0) if add_unit_offset else w
    o_ref[...] = (x_normed * scale).astype(o_ref.dtype)


# Sublane packing: rows per vreg for 1 / 2 / 4-byte element types.
_SUBLANE_PACK = {1: 32, 2: 16, 4: 8, 8: 8}


def _round_up(n: int, m: int) -> int:
    return ((n + m - 1) // m) * m


def _tpu_info() -> tuple[int, int]:
    """Return (physical VMEM bytes, TensorCores per chip) with safe fallbacks."""
    vmem_phys = 64 << 20   # conservative default: v7x per-TC VMEM
    num_cores = 1
    try:
        vmem_phys = int(pltpu.get_tpu_info().vmem_capacity_bytes)
    except Exception:
        pass
    try:
        kind = jax.devices()[0].device_kind.lower()
        if "v7" in kind:       # 2 TensorCores per chip
            num_cores = 2
    except Exception:
        pass
    return vmem_phys, num_cores


def _choose_block_rows(rows: int, hidden: int, in_bytes: int, out_bytes: int,
                       vmem_phys: int, num_cores: int) -> int:
    """Large, dtype-aligned row tile honoring VMEM budget, ~8 MiB/block target,
    and a per-core minimum step count for pipelining, with a ~512-row floor."""
    align = max(_SUBLANE_PACK.get(in_bytes, 8), _SUBLANE_PACK.get(out_bytes, 8))
    full = _round_up(rows, align)
    # Live-VMEM estimate per row: double-buffered input + output blocks plus
    # ~8 B/elem of f32 temporaries from the in-kernel upcast.
    per_row_bytes = hidden * (2 * in_bytes + 2 * out_bytes + 8)
    vmem_budget = max(vmem_phys // 2, 8 << 20)
    by_vmem = max(align, (vmem_budget // per_row_bytes) // align * align)
    # Bytes-per-block target: ~8 MiB of input slab per grid step.
    target_rows = max(align, ((8 << 20) // (hidden * in_bytes)) // align * align)
    size_cap = min(by_vmem, target_rows, full)
    # Prefer >=4 grid steps per core (>=8 on 2-TC chips) so double-buffering can
    # hide the DMA tails, but never shrink below ~512 rows per block.
    min_steps = 4 * max(1, num_cores)
    steps_block = max(align, _round_up(pl.cdiv(rows, min_steps), align))
    floor_rows = max(align, _round_up(min(512, rows), align))
    return max(align, min(size_cap, max(floor_rows, steps_block)))


def rmsnorm(x: jax.Array,
            weight: jax.Array,
            *,
            eps: float = 1e-6,
            add_unit_offset: bool = False,
            block_rows: int | None = None) -> jax.Array:
    """RMSNorm over the last axis of `x`, scaled by `weight` (shape (hidden,))."""
    orig_shape = x.shape
    hidden = orig_shape[-1]
    assert weight.shape == (hidden,)

    rows = 1
    for d in orig_shape[:-1]:
        rows *= d
    x2d = x.reshape(rows, hidden)
    w2d = weight.reshape(1, hidden)

    # Output dtype follows PyTorch type promotion of (x.dtype, weight.dtype).
    out_dtype = jnp.result_type(x.dtype, weight.dtype)
    in_bytes = jnp.dtype(x.dtype).itemsize
    out_bytes = jnp.dtype(out_dtype).itemsize
    w_bytes = jnp.dtype(weight.dtype).itemsize

    vmem_phys, num_cores = _tpu_info()
    if block_rows is None:
        block_rows = _choose_block_rows(rows, hidden, in_bytes, out_bytes,
                                        vmem_phys, num_cores)

    grid = (pl.cdiv(rows, block_rows),)  # partial last block handled by Pallas

    # Derive the scoped-VMEM request from the actual chosen tile sizes
    # (double-buffered in + out blocks, weight, f32 upcast scratch, margin),
    # capped below physical VMEM so it stays safe on v7x's 64 MiB.
    block_in = block_rows * hidden * in_bytes
    block_out = block_rows * hidden * out_bytes
    need = (2 * block_in + 2 * block_out + 2 * hidden * w_bytes
            + block_rows * hidden * 8 + (4 << 20))
    vmem_limit = int(min(max(need, 32 << 20), vmem_phys - (4 << 20)))

    # On 2-TC chips, actually shard the row axis across TensorCores.
    if num_cores > 1:
        dim_semantics = (pltpu.CORE_PARALLEL,)
    else:
        dim_semantics = ("parallel",)

    kernel = functools.partial(
        _rmsnorm_kernel, eps=eps, add_unit_offset=add_unit_offset)

    cost = pl.CostEstimate(
        flops=3 * rows * hidden,
        transcendentals=rows,
        bytes_accessed=rows * hidden * (in_bytes + out_bytes) + hidden * w_bytes)

    out2d = pl.pallas_call(
        kernel,
        out_shape=jax.ShapeDtypeStruct((rows, hidden), out_dtype),
        grid_spec=pltpu.PrefetchScalarGridSpec(
            num_scalar_prefetch=0,
            grid=grid,
            in_specs=[
                pl.BlockSpec((block_rows, hidden), lambda i: (i, 0)),
                # weight tile stays VMEM-resident across the whole grid
                pl.BlockSpec((1, hidden), lambda i: (0, 0)),
            ],
            out_specs=pl.BlockSpec((block_rows, hidden), lambda i: (i, 0)),
        ),
        compiler_params=pltpu.CompilerParams(
            dimension_semantics=dim_semantics,
            vmem_limit_bytes=vmem_limit),
        cost_estimate=cost,
    )(x2d, w2d)

    return out2d.reshape(orig_shape)


def rmsnorm_ref(x, weight, *, eps=1e-6, add_unit_offset=False):
    dtype = x.dtype
    xf = x.astype(jnp.float32)
    norm_x = jnp.mean(xf * xf, axis=-1, keepdims=True)
    x_normed = (xf * lax.rsqrt(norm_x + eps)).astype(dtype)
    if add_unit_offset:
        return x_normed * (1.0 + weight)
    return x_normed * weight


if __name__ == "__main__":
    key = jax.random.PRNGKey(0)
    batch, seq, hidden = 2, 8, 128  # small shapes; hidden is the normalized dim

    kx, kw = jax.random.split(key)
    x = jax.random.normal(kx, (batch, seq, hidden), dtype=jnp.float32)
    # Deterministic parameter init: the module initializes weight to ones.
    weight = jnp.ones((hidden,), dtype=jnp.float32)

    out = rmsnorm(x, weight, eps=1e-6, add_unit_offset=False)
    jax.block_until_ready(out)
    ref = rmsnorm_ref(x, weight, eps=1e-6, add_unit_offset=False)
    assert out.shape == x.shape and out.dtype == x.dtype
    assert jnp.allclose(out, ref, atol=1e-5, rtol=1e-5)

    # add_unit_offset path with a non-trivial weight.
    w2 = 0.1 * jax.random.normal(kw, (hidden,), dtype=jnp.float32)
    out2 = rmsnorm(x, w2, eps=1e-6, add_unit_offset=True)
    jax.block_until_ready(out2)
    ref2 = rmsnorm_ref(x, w2, eps=1e-6, add_unit_offset=True)
    assert jnp.allclose(out2, ref2, atol=1e-5, rtol=1e-5)

    # Non-divisible row count exercises the pad-free partial-block path.
    x3 = jax.random.normal(kw, (3, 5, hidden), dtype=jnp.float32)
    out3 = rmsnorm(x3, weight, eps=1e-6, add_unit_offset=False)
    jax.block_until_ready(out3)
    ref3 = rmsnorm_ref(x3, weight, eps=1e-6, add_unit_offset=False)
    assert jnp.allclose(out3, ref3, atol=1e-5, rtol=1e-5)

    # Larger, non-divisible shape exercises the big-tile / multi-step path.
    x4 = jax.random.normal(kx, (5, 300, hidden), dtype=jnp.bfloat16)
    out4 = rmsnorm(x4, weight, eps=1e-6, add_unit_offset=False)
    jax.block_until_ready(out4)
    ref4 = rmsnorm_ref(x4, weight, eps=1e-6, add_unit_offset=False)
    assert out4.dtype == jnp.result_type(x4.dtype, weight.dtype)
    assert jnp.allclose(out4.astype(jnp.float32), ref4.astype(jnp.float32),
                        atol=2e-2, rtol=2e-2)

    print("KERNEL_OK")
</pallas_src>

<mosaic_0001>
module attributes {stable_mosaic.version = 11 : i64} {
  func.func @_rmsnorm_kernel(%arg0: i32, %arg1: memref<16x128xf32, #tpu.memory_space<vmem>>, %arg2: memref<1x128xf32, #tpu.memory_space<vmem>>, %arg3: memref<16x128xf32, #tpu.memory_space<vmem>>) attributes {dimension_semantics = [#tpu.dimension_semantics<parallel>], iteration_bounds = array<i64: 1>, scalar_prefetch = 0 : i64, scratch_operands = 0 : i64, tpu.core_type = #tpu.core_type<tc>, window_params = [{transform_indices = @transform_0, window_bounds = array<i64: 16, 128>}, {pipeline_mode = #tpu.pipeline_mode<synchronous>, transform_indices = @transform_1, window_bounds = array<i64: 1, 128>}, {transform_indices = @transform_2, window_bounds = array<i64: 16, 128>}]} {
    %c0 = arith.constant 0 : index
    %c0_0 = arith.constant 0 : index
    %0 = vector.load %arg1[%c0, %c0_0] : memref<16x128xf32, #tpu.memory_space<vmem>>, vector<16x128xf32>
    %1 = arith.mulf %0, %0 : vector<16x128xf32>
    %cst = arith.constant dense<0.000000e+00> : vector<16xf32>
    %2 = vector.multi_reduction <add>, %1, %cst [1] : vector<16x128xf32> to vector<16xf32>
    %3 = vector.shape_cast %2 : vector<16xf32> to vector<16x1xf32>
    %cst_1 = arith.constant 1.280000e+02 : f32
    %4 = vector.broadcast %cst_1 : f32 to vector<16x1xf32>
    %5 = arith.divf %3, %4 : vector<16x1xf32>
    %cst_2 = arith.constant 9.99999997E-7 : f32
    %6 = vector.broadcast %cst_2 : f32 to vector<16x1xf32>
    %7 = arith.addf %5, %6 : vector<16x1xf32>
    %8 = math.rsqrt %7 : vector<16x1xf32>
    %9 = vector.broadcast %8 : vector<16x1xf32> to vector<16x128xf32>
    %10 = arith.mulf %0, %9 : vector<16x128xf32>
    %c0_3 = arith.constant 0 : index
    %c0_4 = arith.constant 0 : index
    %11 = vector.load %arg2[%c0_3, %c0_4] : memref<1x128xf32, #tpu.memory_space<vmem>>, vector<1x128xf32>
    %12 = vector.broadcast %11 : vector<1x128xf32> to vector<16x128xf32>
    %13 = arith.mulf %10, %12 : vector<16x128xf32>
    %c0_5 = arith.constant 0 : index
    %c0_6 = arith.constant 0 : index
    %14 = vector.load %arg3[%c0_5, %c0_6] : memref<16x128xf32, #tpu.memory_space<vmem>>, vector<16x128xf32>
    tpu.vector_store %arg3[%c0_5, %c0_6], %13 {strides = array<i32>} : memref<16x128xf32, #tpu.memory_space<vmem>>, vector<16x128xf32>,
    return
  }
  func.func @transform_0(%arg0: i32) -> (i32, i32) {
    %c0_i32 = arith.constant 0 : i32
    %c0_i32_0 = arith.constant 0 : i32
    return %arg0, %c0_i32 : i32, i32
  }
  func.func @transform_1(%arg0: i32) -> (i32, i32) {
    %c0_i32 = arith.constant 0 : i32
    %c0_i32_0 = arith.constant 0 : i32
    %c0_i32_1 = arith.constant 0 : i32
    return %c0_i32, %c0_i32_0 : i32, i32
  }
  func.func @transform_2(%arg0: i32) -> (i32, i32) {
    %c0_i32 = arith.constant 0 : i32
    %c0_i32_0 = arith.constant 0 : i32
    return %arg0, %c0_i32 : i32, i32
  }
}

</mosaic_0001>

<llo_original>
// kernel: tpu_custom_call.1
$region0: #{tpu_custom_call.1}
  #allocation0 [shape = 'u32[]', space=smem, size = 0x4, offset = 0x4, fixed_abs, tag = 'smem constant byte address 0x4 - core index']
  #allocation1 [shape = 'u32[72,128]{1,0:T(1,128)}', space=vmem, size = 0x9000, scoped, tag = 'internal scratch']
  %s0 = inlined_call_operand.hbm [shape: f32[16,128], index: 0, kind: input, shape index: {}]
  %s1 = inlined_call_operand.hbm [shape: f32[1,128], index: 1, kind: input, shape index: {}]
  %s2 = inlined_call_operand.hbm [shape: f32[16,128], index: 2, kind: output, shape index: {}]
  %s3 = sld [smem:[#allocation0]]
  $region26: #{tpu_custom_call.1} parent=0
    _
  %s5 = ssub.s32 1, %s3
  %s6 = scalar_select 0, %s5, %s3
  $region1: #{tpu_custom_call.1} parent=0
    #allocation2 [shape = 'u8[8192]{0}', space=vmem, size = 0x2000, scoped, tag = 'input window, operand 0, single buffered']
    #allocation3 [shape = 's32[1]{0}', space=sflag, size = 0x4, scoped, tag = 'scoped memory for tpu_custom_call.1']
    #allocation4 [shape = 's32[1]{0}', space=sflag, size = 0x4, scoped, tag = 'scoped memory for tpu_custom_call.1']
    #allocation5 [shape = 'u8[512]{0}', space=vmem, size = 0x400, scoped, tag = 'input window, operand 1, single buffered']
    #allocation6 [shape = 's32[1]{0}', space=sflag, size = 0x4, scoped, tag = 'scoped memory for tpu_custom_call.1']
    #allocation7 [shape = 'u8[8192]{0}', space=vmem, size = 0x2000, scoped, tag = 'output window, operand 0, single buffered']
    %7 = vsyncpa [#allocation3], 0
    %8 = vsyncpa [#allocation6], 0
    %9 = vsyncpa [#allocation4], 0
    // Predicated region
    $region2: #{tpu_custom_call.1} parent=1 // pred_check
      _
    $region3: #{tpu_custom_call.1} parent=1 // pred_check_branch
      %11 = sbr.rel (0) target = $region5
    $region4: #{tpu_custom_call.1} parent=1 // pred_region
      %13 = vsyncadd [#allocation3], 0
      %s14 = sshll.u32 %s0, 4
      %s15 = int_to_ptr.hbm [resolvable:$true] %s14
      %s16 = sshll.u32 [#allocation2], 4
      %s17 = int_to_ptr.vmem [resolvable:$true] %s16
      %22 = dma.hbm_to_vmem [thread:$0]  %s15, 256, %s17, [#allocation3], 128, 128, 8
    $region5: #{tpu_custom_call.1} parent=1 // pred_fallthru
      _
    // Predicated region
    $region6: #{tpu_custom_call.1} parent=1 // pred_check
      _
    $region7: #{tpu_custom_call.1} parent=1 // pred_check_branch
      %24 = sbr.rel (0) target = $region9
    $region8: #{tpu_custom_call.1} parent=1 // pred_region
      %26 = vsyncadd [#allocation6], 0
      %s28 = sshll.u32 %s1, 4
      %s29 = int_to_ptr.hbm [resolvable:$true] %s28
      %s30 = sshll.u32 [#allocation5], 4
      %s31 = int_to_ptr.vmem [resolvable:$true] %s30
      %33 = dma.hbm_to_vmem [thread:$0]  %s29, 16, %s31, [#allocation6]
    $region9: #{tpu_custom_call.1} parent=1 // pred_fallthru
      _
    // Predicated region
    $region10: #{tpu_custom_call.1} parent=1 // pred_check
      _
    $region11: #{tpu_custom_call.1} parent=1 // pred_check_branch
      %35 = sbr.rel (0) target = $region13
    $region12: #{tpu_custom_call.1} parent=1 // pred_region
      %37 = dma.done [#allocation3], 256
    $region13: #{tpu_custom_call.1} parent=1 // pred_fallthru
      _
    // Predicated region
    $region14: #{tpu_custom_call.1} parent=1 // pred_check
      _
    $region15: #{tpu_custom_call.1} parent=1 // pred_check_branch
      %39 = sbr.rel (0) target = $region17
    $region16: #{tpu_custom_call.1} parent=1 // pred_region
      %41 = dma.done [#allocation6], 16
    $region17: #{tpu_custom_call.1} parent=1 // pred_fallthru
      _
    %v42 = vld [vmem:[#allocation2] sm:$0xff]
    %v43 = vld [vmem:[#allocation2 + $0x8] sm:$0xff]
    %v44 = vmul.f32 %v42, %v42
    %v45 = vmul.f32 %v43, %v43
    %46 = vadd.xlane.f32.xlu0 %v44
    %v47 = vpop.xlane.xlu0 %46
    %48 = vadd.xlane.f32.xlu0 %v45
    %v49 = vpop.xlane.xlu0 %48
    %v50 = vrcp.pop 128.0
    %v51 = vmul.f32 128.0, %v50
    %v52 = vsub.f32 1.0, %v51
    %v53 = vmul.f32 %v50, %v52
    %v54 = vadd.f32 %v50, %v53
    %vm55 = vweird.f32 %v50
    %v56 = vsel %vm55, %v50, %v54
    %v57 = vmul.f32 %v47, %v56
    %v58 = vmul.f32 %v49, %v56
    %v59 = vadd.f32 %v57, 1e-06
    %v60 = vadd.f32 %v58, 1e-06
    %v61 = vrsqrt.pop %v59
    %v62 = vmul.f32 %v61, %v59
    %v63 = vmul.f32 %v62, %v61
    %v64 = vmul.f32 0.5, %v63
    %v65 = vsub.f32 1.5, %v64
    %v66 = vmul.f32 %v61, %v65
    %vm67 = vweird.f32 %v59
    %vm68 = vweird.f32 %v61
    %vm69 = vmor %vm67, %vm68
    %v70 = vsel %vm69, %v61, %v66
    %v71 = vrsqrt.pop %v60
    %v72 = vmul.f32 %v71, %v60
    %v73 = vmul.f32 %v72, %v71
    %v74 = vmul.f32 0.5, %v73
    %v75 = vsub.f32 1.5, %v74
    %v76 = vmul.f32 %v71, %v75
    %vm77 = vweird.f32 %v60
    %vm78 = vweird.f32 %v71
    %vm79 = vmor %vm77, %vm78
    %v80 = vsel %vm79, %v71, %v76
    %v81 = vmul.f32 %v42, %v70
    %v82 = vmul.f32 %v43, %v80
    %v83 = vld [vmem:[#allocation5] sm:$0x1]
    %v85 = vperm.slane %v83, 0
    %v87 = vmul.f32 %v81, %v85
    %v88 = vmul.f32 %v82, %v85
    %89 = vst [vmem:[#allocation7] sm:$0xff] %v87
    %90 = vst [vmem:[#allocation7 + $0x8] sm:$0xff] %v88
    // Predicated region
    $region18: #{tpu_custom_call.1} parent=1 // pred_check
      _
    $region19: #{tpu_custom_call.1} parent=1 // pred_check_branch
      %92 = sbr.rel (0) target = $region21
    $region20: #{tpu_custom_call.1} parent=1 // pred_region
      %94 = vsyncadd [#allocation4], 0
      %s95 = sshll.u32 [#allocation7], 4
      %s96 = int_to_ptr.vmem [resolvable:$true] %s95
      %s97 = sshll.u32 %s2, 4
      %s98 = int_to_ptr.hbm [resolvable:$true] %s97
      %103 = dma.vmem_to_hbm [thread:$0]  %s96, 256, %s98, [#allocation4], 128, 128, 8
    $region21: #{tpu_custom_call.1} parent=1 // pred_fallthru
      _
    // Predicated region
    $region22: #{tpu_custom_call.1} parent=1 // pred_check
      _
    $region23: #{tpu_custom_call.1} parent=1 // pred_check_branch
      %105 = sbr.rel (0) target = $region25
    $region24: #{tpu_custom_call.1} parent=1 // pred_region
      %107 = dma.done [#allocation4], 256
    $region25: #{tpu_custom_call.1} parent=1 // pred_fallthru
      _
    %108 = vsyncpa [#allocation3], 1
    %109 = vsyncpa [#allocation6], 1
    %110 = vsyncpa [#allocation4], 1

</llo_original>
